<compile_context>
chip_gen: v6e
topology: v6e:2x2x1
jax: 0.10.0
libtpu: 0.0.40
codegen_flags: <defaults>
</compile_context>

<pallas_src>
import jax
import jax.numpy as jnp
from jax.experimental import pallas as pl
from jax.experimental.pallas import tpu as pltpu


def _round_up(x, m):
    return ((x + m - 1) // m) * m


def _critic_kernel(xt_ref, w1t_ref, b1_ref, w2t_ref, b2_ref, w3_ref, b3_ref, o_ref):
    # xt: (S, TB) state^T tile, w1t: (H, S), b1: (H, 1), w2t: (H, H),
    # b2: (H, 1), w3: (H, 1), b3: (1, 1), o: (1, TB) lane-dense (batch on lanes).
    xt = xt_ref[...]

    # Layer 1: MXU matmul (f32 accumulation) + lane-broadcast bias + tanh (EUP).
    h1 = jnp.tanh(
        jnp.dot(w1t_ref[...], xt, preferred_element_type=jnp.float32) + b1_ref[...]
    )  # (H, TB), lane-dense

    # Layer 2: MXU matmul + bias + tanh, still lane-dense.
    h1c = h1.astype(w2t_ref.dtype)
    h2 = jnp.tanh(
        jnp.dot(w2t_ref[...], h1c, preferred_element_type=jnp.float32) + b2_ref[...]
    )  # (H, TB)

    # Layer 3 (H -> 1): broadcast multiply (VPU) + sublane reduce (XLU) that
    # lands directly in the lane-dense (1, TB) output -- no tail relayout.
    w3 = w3_ref[...].astype(jnp.float32)                       # (H, 1)
    v = jnp.sum(h2 * w3, axis=0, keepdims=True)                # (1, TB)
    o_ref[...] = (v + b3_ref[...]).astype(o_ref.dtype)


def critic_forward(state, params, *, block_b=2048, compute_dtype=None):
    """state: (B, state_dim) -> (B,) float32 (matches .squeeze(-1)).

    compute_dtype defaults to state.dtype (no standalone wrapper cast).  On
    v6e/v7x, hand the kernel bf16 `state` to halve input HBM traffic; all
    post-MXU math stays f32 in-kernel (v5e-safe).
    """
    w1, b1, w2, b2, w3, b3 = params
    B, S = state.shape
    H = w1.shape[1]

    if compute_dtype is None:
        compute_dtype = state.dtype

    # Batch tile (lanes): multiple of 128, >= 2 grid steps whenever B > 128
    # (v7x two-TC sharding via "parallel"); full-extent block for tiny B.
    if B <= 128:
        TB = B
    else:
        TB = min(_round_up(block_b, 128), max(128, _round_up(pl.cdiv(B, 2), 128)))
    grid = (pl.cdiv(B, TB),)

    # Transpose once (a producer could emit state^T directly and skip this
    # pass entirely).  No full-array padding: the ragged last block's
    # out-of-bounds columns are undefined but their outputs are discarded.
    xt = state.T
    if xt.dtype != compute_dtype:
        xt = xt.astype(compute_dtype)

    w1t = w1.T.astype(compute_dtype)                 # (H, S)
    w2t = w2.T.astype(compute_dtype)                 # (H, H)
    b1c = b1.reshape(H, 1).astype(jnp.float32)       # (H, 1)
    b2c = b2.reshape(H, 1).astype(jnp.float32)       # (H, 1)
    w3c = w3.reshape(H, 1).astype(compute_dtype)     # (H, 1)
    b3c = b3.reshape(1, 1).astype(jnp.float32)       # (1, 1)

    # Weights/biases: full blocks, constant index_map -> VMEM-resident.
    def resident(a):
        return pl.BlockSpec(a.shape, lambda i, _nd=a.ndim: (0,) * _nd)

    bytes_per = jnp.dtype(compute_dtype).itemsize
    cost = pl.CostEstimate(
        flops=2 * B * (S * H + H * H + H),
        transcendentals=2 * B * H,
        bytes_accessed=(
            B * S * bytes_per                        # state in
            + B * 4                                  # values out
            + (S * H + H * H + H) * bytes_per        # weights
            + (2 * H + 1) * 4                        # biases
        ),
    )

    out = pl.pallas_call(
        _critic_kernel,
        out_shape=jax.ShapeDtypeStruct((1, B), jnp.float32),
        grid=grid,
        in_specs=[
            pl.BlockSpec((S, TB), lambda i: (0, i)),   # state^T tiles, pipelined
            resident(w1t), resident(b1c),
            resident(w2t), resident(b2c),
            resident(w3c), resident(b3c),
        ],
        out_specs=pl.BlockSpec((1, TB), lambda i: (0, i)),     # lane-dense output
        compiler_params=pltpu.CompilerParams(
            dimension_semantics=("parallel",),
            vmem_limit_bytes=32 * 1024 * 1024,
        ),
        cost_estimate=cost,
    )(xt, w1t, b1c, w2t, b2c, w3c, b3c)

    return out[0]  # (B,) == squeeze(-1)


def init_critic_params(key, state_dim, hidden_dim):
    """Deterministic init mimicking PyTorch nn.Linear default (U(-1/sqrt(fan_in), +))."""
    ks = jax.random.split(key, 6)

    def linear(kw, kb, fan_in, fan_out):
        bound = 1.0 / jnp.sqrt(jnp.float32(fan_in))
        w = jax.random.uniform(kw, (fan_in, fan_out), jnp.float32, -bound, bound)
        b = jax.random.uniform(kb, (1, fan_out), jnp.float32, -bound, bound)
        return w, b

    w1, b1 = linear(ks[0], ks[1], state_dim, hidden_dim)
    w2, b2 = linear(ks[2], ks[3], hidden_dim, hidden_dim)
    w3, b3 = linear(ks[4], ks[5], hidden_dim, 1)
    return (w1, b1, w2, b2, w3, b3)


def _reference(state, params):
    w1, b1, w2, b2, w3, b3 = params
    h = jnp.tanh(state @ w1 + b1)
    h = jnp.tanh(h @ w2 + b2)
    return (h @ w3 + b3)[:, 0]


if __name__ == "__main__":
    key = jax.random.PRNGKey(0)
    k_param, k_state, k_state2 = jax.random.split(key, 3)

    batch, state_dim, hidden_dim = 8, 16, 32
    params = init_critic_params(k_param, state_dim, hidden_dim)

    # Small-shape check (single full-extent block).
    state = jax.random.normal(k_state, (batch, state_dim), jnp.float32)
    values = critic_forward(state, params)
    jax.block_until_ready(values)
    ref = _reference(state, params)
    assert values.shape == (batch,)
    assert jnp.allclose(values, ref, atol=1e-5), "mismatch vs reference (B=8)"

    # Multi-step grid + ragged last block (no padding pass; f32 so 1e-5 holds;
    # a bf16 compute_dtype would need a looser, dtype-aware tolerance).
    batch2 = 300
    state2 = jax.random.normal(k_state2, (batch2, state_dim), jnp.float32)
    values2 = critic_forward(state2, params)
    jax.block_until_ready(values2)
    ref2 = _reference(state2, params)
    assert values2.shape == (batch2,)
    assert jnp.allclose(values2, ref2, atol=1e-5), "mismatch vs reference (B=300)"

    print("KERNEL_OK")
</pallas_src>

<mosaic_0001>
module attributes {stable_mosaic.version = 11 : i64} {
  func.func @_critic_kernel(%arg0: i32, %arg1: memref<16x8xf32, #tpu.memory_space<vmem>>, %arg2: memref<32x16xf32, #tpu.memory_space<vmem>>, %arg3: memref<32x1xf32, #tpu.memory_space<vmem>>, %arg4: memref<32x32xf32, #tpu.memory_space<vmem>>, %arg5: memref<32x1xf32, #tpu.memory_space<vmem>>, %arg6: memref<32x1xf32, #tpu.memory_space<vmem>>, %arg7: memref<1x1xf32, #tpu.memory_space<vmem>>, %arg8: memref<1x8xf32, #tpu.memory_space<vmem>>) attributes {dimension_semantics = [#tpu.dimension_semantics<parallel>], iteration_bounds = array<i64: 1>, scalar_prefetch = 0 : i64, scratch_operands = 0 : i64, tpu.core_type = #tpu.core_type<tc>, window_params = [{transform_indices = @transform_0, window_bounds = array<i64: 16, 8>}, {pipeline_mode = #tpu.pipeline_mode<synchronous>, transform_indices = @transform_1, window_bounds = array<i64: 32, 16>}, {pipeline_mode = #tpu.pipeline_mode<synchronous>, transform_indices = @transform_2, window_bounds = array<i64: 32, 1>}, {pipeline_mode = #tpu.pipeline_mode<synchronous>, transform_indices = @transform_3, window_bounds = array<i64: 32, 32>}, {pipeline_mode = #tpu.pipeline_mode<synchronous>, transform_indices = @transform_4, window_bounds = array<i64: 32, 1>}, {pipeline_mode = #tpu.pipeline_mode<synchronous>, transform_indices = @transform_5, window_bounds = array<i64: 32, 1>}, {pipeline_mode = #tpu.pipeline_mode<synchronous>, transform_indices = @transform_6, window_bounds = array<i64: 1, 1>}, {transform_indices = @transform_7, window_bounds = array<i64: 1, 8>}]} {
    %c0 = arith.constant 0 : index
    %c0_0 = arith.constant 0 : index
    %0 = vector.load %arg1[%c0, %c0_0] : memref<16x8xf32, #tpu.memory_space<vmem>>, vector<16x8xf32>
    %c0_1 = arith.constant 0 : index
    %c0_2 = arith.constant 0 : index
    %1 = vector.load %arg2[%c0_1, %c0_2] : memref<32x16xf32, #tpu.memory_space<vmem>>, vector<32x16xf32>
    %cst = arith.constant dense<0.000000e+00> : vector<32x8xf32>
    %2 = tpu.matmul %1, %0, %cst {dimension_numbers = #tpu.dot_dimension_numbers<[1], [0], [0], [1], [0, 0, 1, 1], [], []>} : vector<32x16xf32>, vector<16x8xf32>, vector<32x8xf32> -> vector<32x8xf32>
    %c0_3 = arith.constant 0 : index
    %c0_4 = arith.constant 0 : index
    %3 = vector.load %arg3[%c0_3, %c0_4] : memref<32x1xf32, #tpu.memory_space<vmem>>, vector<32x1xf32>
    %4 = vector.broadcast %3 : vector<32x1xf32> to vector<32x8xf32>
    %5 = arith.addf %2, %4 : vector<32x8xf32>
    %6 = math.tanh %5 : vector<32x8xf32>
    %c0_5 = arith.constant 0 : index
    %c0_6 = arith.constant 0 : index
    %7 = vector.load %arg4[%c0_5, %c0_6] : memref<32x32xf32, #tpu.memory_space<vmem>>, vector<32x32xf32>
    %cst_7 = arith.constant dense<0.000000e+00> : vector<32x8xf32>
    %8 = tpu.matmul %7, %6, %cst_7 {dimension_numbers = #tpu.dot_dimension_numbers<[1], [0], [0], [1], [0, 0, 1, 1], [], []>} : vector<32x32xf32>, vector<32x8xf32>, vector<32x8xf32> -> vector<32x8xf32>
    %c0_8 = arith.constant 0 : index
    %c0_9 = arith.constant 0 : index
    %9 = vector.load %arg5[%c0_8, %c0_9] : memref<32x1xf32, #tpu.memory_space<vmem>>, vector<32x1xf32>
    %10 = vector.broadcast %9 : vector<32x1xf32> to vector<32x8xf32>
    %11 = arith.addf %8, %10 : vector<32x8xf32>
    %12 = math.tanh %11 : vector<32x8xf32>
    %c0_10 = arith.constant 0 : index
    %c0_11 = arith.constant 0 : index
    %13 = vector.load %arg6[%c0_10, %c0_11] : memref<32x1xf32, #tpu.memory_space<vmem>>, vector<32x1xf32>
    %14 = vector.broadcast %13 : vector<32x1xf32> to vector<32x8xf32>
    %15 = arith.mulf %12, %14 : vector<32x8xf32>
    %cst_12 = arith.constant dense<0.000000e+00> : vector<8xf32>
    %16 = vector.multi_reduction <add>, %15, %cst_12 [0] : vector<32x8xf32> to vector<8xf32>
    %17 = vector.shape_cast %16 : vector<8xf32> to vector<1x8xf32>
    %c0_13 = arith.constant 0 : index
    %c0_14 = arith.constant 0 : index
    %18 = vector.load %arg7[%c0_13, %c0_14] : memref<1x1xf32, #tpu.memory_space<vmem>>, vector<1x1xf32>
    %19 = vector.broadcast %18 : vector<1x1xf32> to vector<1x8xf32>
    %20 = arith.addf %17, %19 : vector<1x8xf32>
    %c0_15 = arith.constant 0 : index
    %c0_16 = arith.constant 0 : index
    %21 = vector.load %arg8[%c0_15, %c0_16] : memref<1x8xf32, #tpu.memory_space<vmem>>, vector<1x8xf32>
    tpu.vector_store %arg8[%c0_15, %c0_16], %20 {strides = array<i32>} : memref<1x8xf32, #tpu.memory_space<vmem>>, vector<1x8xf32>,
    return
  }
  func.func @transform_0(%arg0: i32) -> (i32, i32) {
    %c0_i32 = arith.constant 0 : i32
    %c0_i32_0 = arith.constant 0 : i32
    return %c0_i32, %arg0 : i32, i32
  }
  func.func @transform_1(%arg0: i32) -> (i32, i32) {
    %c0_i32 = arith.constant 0 : i32
    %c0_i32_0 = arith.constant 0 : i32
    %c0_i32_1 = arith.constant 0 : i32
    return %c0_i32, %c0_i32_0 : i32, i32
  }
  func.func @transform_2(%arg0: i32) -> (i32, i32) {
    %c0_i32 = arith.constant 0 : i32
    %c0_i32_0 = arith.constant 0 : i32
    %c0_i32_1 = arith.constant 0 : i32
    return %c0_i32, %c0_i32_0 : i32, i32
  }
  func.func @transform_3(%arg0: i32) -> (i32, i32) {
    %c0_i32 = arith.constant 0 : i32
    %c0_i32_0 = arith.constant 0 : i32
    %c0_i32_1 = arith.constant 0 : i32
    return %c0_i32, %c0_i32_0 : i32, i32
  }
  func.func @transform_4(%arg0: i32) -> (i32, i32) {
    %c0_i32 = arith.constant 0 : i32
    %c0_i32_0 = arith.constant 0 : i32
    %c0_i32_1 = arith.constant 0 : i32
    return %c0_i32, %c0_i32_0 : i32, i32
  }
  func.func @transform_5(%arg0: i32) -> (i32, i32) {
    %c0_i32 = arith.constant 0 : i32
    %c0_i32_0 = arith.constant 0 : i32
    %c0_i32_1 = arith.constant 0 : i32
    return %c0_i32, %c0_i32_0 : i32, i32
  }
  func.func @transform_6(%arg0: i32) -> (i32, i32) {
    %c0_i32 = arith.constant 0 : i32
    %c0_i32_0 = arith.constant 0 : i32
    %c0_i32_1 = arith.constant 0 : i32
    return %c0_i32, %c0_i32_0 : i32, i32
  }
  func.func @transform_7(%arg0: i32) -> (i32, i32) {
    %c0_i32 = arith.constant 0 : i32
    %c0_i32_0 = arith.constant 0 : i32
    return %c0_i32, %arg0 : i32, i32
  }
}

</mosaic_0001>

<llo_original>
// kernel: tpu_custom_call.1
$region0: #{tpu_custom_call.1}
  #allocation0 [shape = 'u32[]', space=smem, size = 0x4, offset = 0x4, fixed_abs, tag = 'smem constant byte address 0x4 - core index']
  #allocation1 [shape = 'u32[144,128]{1,0:T(1,128)}', space=vmem, size = 0x12000, scoped, tag = 'internal scratch']
  #allocation2 [shape = 'f32[1,1]{1,0:T(1,128)S(1)}', space=vmem, size = 0x200, scoped, tag = 'scoped memory for tpu_custom_call.1']
  %s0 = inlined_call_operand.vmem [shape: f32[16,8], index: 0, kind: input, shape index: {}]
  %s1 = inlined_call_operand.vmem [shape: f32[32,16], index: 1, kind: input, shape index: {}]
  %s2 = inlined_call_operand.vmem [shape: f32[32,1], index: 2, kind: input, shape index: {}]
  %s3 = inlined_call_operand.vmem [shape: f32[32,32], index: 3, kind: input, shape index: {}]
  %s4 = inlined_call_operand.vmem [shape: f32[32,1], index: 4, kind: input, shape index: {}]
  %s5 = inlined_call_operand.vmem [shape: f32[32,1], index: 5, kind: input, shape index: {}]
  %s6 = inlined_call_operand.<no memory space> [shape: f32[1,1], index: 6, kind: input, shape index: {}]
  %s7 = inlined_call_operand.hbm [shape: f32[1,8], index: 7, kind: output, shape index: {}]
  %s8 = sld [smem:[#allocation0]]
  $region38: #{tpu_custom_call.1} parent=0
    _
  %s10 = ssub.s32 1, %s8
  %s11 = scalar_select 0, %s10, %s8
  %v12 = vstv %s6
  %13 = vst [vmem:[#allocation2] sm:$0x1] %v12
  $region1: #{tpu_custom_call.1} parent=0
    #allocation3 [shape = 'u8[512]{0}', space=vmem, size = 0x400, scoped, tag = 'output window, operand 0, single buffered']
    #allocation4 [shape = 's32[1]{0}', space=sflag, size = 0x4, scoped, tag = 'scoped memory for tpu_custom_call.1']
    %14 = vsyncpa [#allocation4], 0
    // Predicated region
    $region2: #{tpu_custom_call.1} parent=1 // pred_check
      _
    $region3: #{tpu_custom_call.1} parent=1 // pred_check_branch
      %16 = sbr.rel (0) target = $region5
    $region4: #{tpu_custom_call.1} parent=1 // pred_region
      _
    $region5: #{tpu_custom_call.1} parent=1 // pred_fallthru
      _
    // Predicated region
    $region6: #{tpu_custom_call.1} parent=1 // pred_check
      _
    $region7: #{tpu_custom_call.1} parent=1 // pred_check_branch
      %18 = sbr.rel (0) target = $region9
    $region8: #{tpu_custom_call.1} parent=1 // pred_region
      _
    $region9: #{tpu_custom_call.1} parent=1 // pred_fallthru
      _
    // Predicated region
    $region10: #{tpu_custom_call.1} parent=1 // pred_check
      _
    $region11: #{tpu_custom_call.1} parent=1 // pred_check_branch
      %20 = sbr.rel (0) target = $region13
    $region12: #{tpu_custom_call.1} parent=1 // pred_region
      _
    $region13: #{tpu_custom_call.1} parent=1 // pred_fallthru
      _
    // Predicated region
    $region14: #{tpu_custom_call.1} parent=1 // pred_check
      _
    $region15: #{tpu_custom_call.1} parent=1 // pred_check_branch
      %22 = sbr.rel (0) target = $region17
    $region16: #{tpu_custom_call.1} parent=1 // pred_region
      _
    $region17: #{tpu_custom_call.1} parent=1 // pred_fallthru
      _
    // Predicated region
    $region18: #{tpu_custom_call.1} parent=1 // pred_check
      _
    $region19: #{tpu_custom_call.1} parent=1 // pred_check_branch
      %24 = sbr.rel (0) target = $region21
    $region20: #{tpu_custom_call.1} parent=1 // pred_region
      _
    $region21: #{tpu_custom_call.1} parent=1 // pred_fallthru
      _
    // Predicated region
    $region22: #{tpu_custom_call.1} parent=1 // pred_check
      _
    $region23: #{tpu_custom_call.1} parent=1 // pred_check_branch
      %26 = sbr.rel (0) target = $region25
    $region24: #{tpu_custom_call.1} parent=1 // pred_region
      _
    $region25: #{tpu_custom_call.1} parent=1 // pred_fallthru
      _
    // Predicated region
    $region26: #{tpu_custom_call.1} parent=1 // pred_check
      _
    $region27: #{tpu_custom_call.1} parent=1 // pred_check_branch
      %28 = sbr.rel (0) target = $region29
    $region28: #{tpu_custom_call.1} parent=1 // pred_region
      _
    $region29: #{tpu_custom_call.1} parent=1 // pred_fallthru
      _
    %v29 = vld [vmem:[%s0] sm:$0xff]
    %v30 = vld [vmem:[%s0 + $0x8] sm:$0xff]
    %v31 = vld [vmem:[%s1] sm:$0xff]
    %v32 = vld [vmem:[%s1 + $0x8] sm:$0xff]
    %v33 = vld [vmem:[%s1 + $0x10] sm:$0xff]
    %v34 = vld [vmem:[%s1 + $0x18] sm:$0xff]
    %v35 = vld [vmem:[%s2] sm:$0xff]
    %v36 = vld [vmem:[%s2 + $0x8] sm:$0xff]
    %v37 = vld [vmem:[%s2 + $0x10] sm:$0xff]
    %v38 = vld [vmem:[%s2 + $0x18] sm:$0xff]
    %40 = vset.pattern.permute.xlu0 0
    %41 = vperm.xlu0 %40, %v35
    %v42 = vpop.permute.xlu0 %41
    %45 = vset.pattern.permute.xlu0 0
    %46 = vperm.xlu0 %45, %v36
    %v47 = vpop.permute.xlu0 %46
    %50 = vset.pattern.permute.xlu0 0
    %51 = vperm.xlu0 %50, %v37
    %v52 = vpop.permute.xlu0 %51
    %55 = vset.pattern.permute.xlu0 0
    %56 = vperm.xlu0 %55, %v38
    %v57 = vpop.permute.xlu0 %56
    %vm59 = vcmask 130048
    %v61 = vsel %vm59, %v31, 0
    %v64 = vsel %vm59, %v32, 0
    %v67 = vsel %vm59, %v33, 0
    %v70 = vsel %vm59, %v34, 0
    %72 = vmatprep.subr.mxu0 0.0
    %73 = vmatpush1.msra.mxu0 0.0
    %74 = vmatprep.subr.mxu0 0.0
    %75 = vmatpush1.msra.mxu0 0.0
    %76 = vmatprep.subr.mxu0 0.0
    %77 = vmatpush1.msra.mxu0 0.0
    %78 = vmatprep.subr.mxu0 0.0
    %79 = vmatpush1.msra.mxu0 0.0
    %80 = vmatprep.subr.mxu0 0.0
    %81 = vmatpush1.msra.mxu0 0.0
    %82 = vmatprep.subr.mxu0 0.0
    %83 = vmatpush1.msra.mxu0 0.0
    %84 = vmatprep.subr.mxu0 0.0
    %85 = vmatpush1.msra.mxu0 0.0
    %86 = vmatprep.subr.mxu0 0.0
    %87 = vmatpush1.msra.mxu0 0.0
    %88 = vmatprep.subr.mxu0 0.0
    %89 = vmatpush1.msra.mxu0 0.0
    %90 = vmatprep.subr.mxu0 0.0
    %91 = vmatpush1.msra.mxu0 0.0
    %92 = vmatprep.subr.mxu0 0.0
    %93 = vmatpush1.msra.mxu0 0.0
    %94 = vmatprep.subr.mxu0 0.0
    %95 = vmatpush1.msra.mxu0 0.0
    %96 = vmatprep.subr.mxu0 0.0
    %97 = vmatpush1.msra.mxu0 0.0
    %98 = vmatprep.subr.mxu0 0.0
    %99 = vmatpush1.msra.mxu0 0.0
    %100 = vmatprep.subr.mxu0 0.0
    %101 = vmatpush1.msra.mxu0 %v30
    %102 = vmatprep.subr.mxu0 0.0
    %103 = vmatpush1.msra.mxu0 %v29
    %104 = vmatprep.subr.mxu0 0.0
    %105 = vmatpush2.msra.mxu0 0.0
    %106 = vmatprep.subr.mxu0 0.0
    %107 = vmatpush2.msra.mxu0 0.0
    %108 = vmatprep.subr.mxu0 0.0
    %109 = vmatpush2.msra.mxu0 0.0
    %110 = vmatprep.subr.mxu0 0.0
    %111 = vmatpush2.msra.mxu0 0.0
    %112 = vmatprep.subr.mxu0 0.0
    %113 = vmatpush2.msra.mxu0 0.0
    %114 = vmatprep.subr.mxu0 0.0
    %115 = vmatpush2.msra.mxu0 0.0
    %116 = vmatprep.subr.mxu0 0.0
    %117 = vmatpush2.msra.mxu0 0.0
    %118 = vmatprep.subr.mxu0 0.0
    %119 = vmatpush2.msra.mxu0 0.0
    %120 = vmatprep.subr.mxu0 0.0
    %121 = vmatpush2.msra.mxu0 0.0
    %122 = vmatprep.subr.mxu0 0.0
    %123 = vmatpush2.msra.mxu0 0.0
    %124 = vmatprep.subr.mxu0 0.0
    %125 = vmatpush2.msra.mxu0 0.0
    %126 = vmatprep.subr.mxu0 0.0
    %127 = vmatpush2.msra.mxu0 0.0
    %128 = vmatprep.subr.mxu0 0.0
    %129 = vmatpush2.msra.mxu0 0.0
    %130 = vmatprep.subr.mxu0 0.0
    %131 = vmatpush2.msra.mxu0 0.0
    %132 = vmatprep.subr.mxu0 0.0
    %133 = vmatpush2.msra.mxu0 0.0
    %134 = vmatprep.subr.mxu0 0.0
    %135 = vmatpush2.msra.mxu0 0.0
    %136 = vmatprep.mubr.f32.mxu0 0.0
    %137 = vmatmul.mubr.f32.gmra.mxu0 %v61
    %v138 = vpop.f32.mrf.mxu0
    %v139 = vadd.f32 %v42, %v138
    %v140 = vpop.f32.mrf.mxu0
    %141 = vmatprep.mubr.f32.mxu0 0.0
    %142 = vmatmul.mubr.f32.gmra.mxu0 %v64
    %v143 = vpop.f32.mrf.mxu0
    %v144 = vadd.f32 %v47, %v143
    %v145 = vpop.f32.mrf.mxu0
    %146 = vmatprep.mubr.f32.mxu0 0.0
    %147 = vmatmul.mubr.f32.gmra.mxu0 %v67
    %v148 = vpop.f32.mrf.mxu0
    %v149 = vadd.f32 %v52, %v148
    %v150 = vpop.f32.mrf.mxu0
    %151 = vmatprep.mubr.f32.mxu0 0.0
    %152 = vmatmul.mubr.f32.gmra.mxu0 %v70
    %v153 = vpop.f32.mrf.mxu0
    %v154 = vadd.f32 %v57, %v153
    %v155 = vpop.f32.mrf.mxu0
    %156 = vdwg.mxu0
    %v157 = vtanh.pop %v139
    %v158 = vtanh.pop %v144
    %v159 = vtanh.pop %v149
    %v160 = vtanh.pop %v154
    %v161 = vld [vmem:[%s3] sm:$0xff]
    %v162 = vld [vmem:[%s3 + $0x8] sm:$0xff]
    %v163 = vld [vmem:[%s3 + $0x10] sm:$0xff]
    %v164 = vld [vmem:[%s3 + $0x18] sm:$0xff]
    %v165 = vld [vmem:[%s4] sm:$0xff]
    %v166 = vld [vmem:[%s4 + $0x8] sm:$0xff]
    %v167 = vld [vmem:[%s4 + $0x10] sm:$0xff]
    %v168 = vld [vmem:[%s4 + $0x18] sm:$0xff]
    %170 = vset.pattern.permute.xlu0 0
    %171 = vperm.xlu0 %170, %v165
    %v172 = vpop.permute.xlu0 %171
    %175 = vset.pattern.permute.xlu0 0
    %176 = vperm.xlu0 %175, %v166
    %v177 = vpop.permute.xlu0 %176
    %180 = vset.pattern.permute.xlu0 0
    %181 = vperm.xlu0 %180, %v167
    %v182 = vpop.permute.xlu0 %181
    %185 = vset.pattern.permute.xlu0 0
    %186 = vperm.xlu0 %185, %v168
    %v187 = vpop.permute.xlu0 %186
    %vm189 = vcmask 261120
    %v191 = vsel %vm189, %v161, 0
    %v194 = vsel %vm189, %v162, 0
    %v197 = vsel %vm189, %v163, 0
    %v200 = vsel %vm189, %v164, 0
    %202 = vmatprep.subr.mxu0 0.0
    %203 = vmatpush1.msra.mxu0 0.0
    %204 = vmatprep.subr.mxu0 0.0
    %205 = vmatpush1.msra.mxu0 0.0
    %206 = vmatprep.subr.mxu0 0.0
    %207 = vmatpush1.msra.mxu0 0.0
    %208 = vmatprep.subr.mxu0 0.0
    %209 = vmatpush1.msra.mxu0 0.0
    %210 = vmatprep.subr.mxu0 0.0
    %211 = vmatpush1.msra.mxu0 0.0
    %212 = vmatprep.subr.mxu0 0.0
    %213 = vmatpush1.msra.mxu0 0.0
    %214 = vmatprep.subr.mxu0 0.0
    %215 = vmatpush1.msra.mxu0 0.0
    %216 = vmatprep.subr.mxu0 0.0
    %217 = vmatpush1.msra.mxu0 0.0
    %218 = vmatprep.subr.mxu0 0.0
    %219 = vmatpush1.msra.mxu0 0.0
    %220 = vmatprep.subr.mxu0 0.0
    %221 = vmatpush1.msra.mxu0 0.0
    %222 = vmatprep.subr.mxu0 0.0
    %223 = vmatpush1.msra.mxu0 0.0
    %224 = vmatprep.subr.mxu0 0.0
    %225 = vmatpush1.msra.mxu0 0.0
    %226 = vmatprep.subr.mxu0 0.0
    %227 = vmatpush1.msra.mxu0 %v160
    %228 = vmatprep.subr.mxu0 0.0
    %229 = vmatpush1.msra.mxu0 %v159
    %230 = vmatprep.subr.mxu0 0.0
    %231 = vmatpush1.msra.mxu0 %v158
    %232 = vmatprep.subr.mxu0 0.0
    %233 = vmatpush1.msra.mxu0 %v157
    %234 = vmatprep.subr.mxu0 0.0
    %235 = vmatpush2.msra.mxu0 0.0
    %236 = vmatprep.subr.mxu0 0.0
    %237 = vmatpush2.msra.mxu0 0.0
    %238 = vmatprep.subr.mxu0 0.0
    %239 = vmatpush2.msra.mxu0 0.0
    %240 = vmatprep.subr.mxu0 0.0
    %241 = vmatpush2.msra.mxu0 0.0
    %242 = vmatprep.subr.mxu0 0.0
    %243 = vmatpush2.msra.mxu0 0.0
    %244 = vmatprep.subr.mxu0 0.0
    %245 = vmatpush2.msra.mxu0 0.0
    %246 = vmatprep.subr.mxu0 0.0
    %247 = vmatpush2.msra.mxu0 0.0
    %248 = vmatprep.subr.mxu0 0.0
    %249 = vmatpush2.msra.mxu0 0.0
    %250 = vmatprep.subr.mxu0 0.0
    %251 = vmatpush2.msra.mxu0 0.0
    %252 = vmatprep.subr.mxu0 0.0
    %253 = vmatpush2.msra.mxu0 0.0
    %254 = vmatprep.subr.mxu0 0.0
    %255 = vmatpush2.msra.mxu0 0.0
    %256 = vmatprep.subr.mxu0 0.0
    %257 = vmatpush2.msra.mxu0 0.0
    %258 = vmatprep.subr.mxu0 0.0
    %259 = vmatpush2.msra.mxu0 0.0
    %260 = vmatprep.subr.mxu0 0.0
    %261 = vmatpush2.msra.mxu0 0.0
    %262 = vmatprep.subr.mxu0 0.0
    %263 = vmatpush2.msra.mxu0 0.0
    %264 = vmatprep.subr.mxu0 0.0
    %265 = vmatpush2.msra.mxu0 0.0
    %266 = vmatprep.mubr.f32.mxu0 0.0
    %267 = vmatmul.mubr.f32.gmra.mxu0 %v191
    %v268 = vpop.f32.mrf.mxu0
    %v269 = vadd.f32 %v172, %v268
    %v270 = vpop.f32.mrf.mxu0
    %271 = vmatprep.mubr.f32.mxu0 0.0
    %272 = vmatmul.mubr.f32.gmra.mxu0 %v194
    %v273 = vpop.f32.mrf.mxu0
    %v274 = vadd.f32 %v177, %v273
    %v275 = vpop.f32.mrf.mxu0
    %276 = vmatprep.mubr.f32.mxu0 0.0
    %277 = vmatmul.mubr.f32.gmra.mxu0 %v197
    %v278 = vpop.f32.mrf.mxu0
    %v279 = vadd.f32 %v182, %v278
    %v280 = vpop.f32.mrf.mxu0
    %281 = vmatprep.mubr.f32.mxu0 0.0
    %282 = vmatmul.mubr.f32.gmra.mxu0 %v200
    %v283 = vpop.f32.mrf.mxu0
    %v284 = vadd.f32 %v187, %v283
    %v285 = vpop.f32.mrf.mxu0
    %286 = vdwg.mxu0
    %v287 = vtanh.pop %v269
    %v288 = vtanh.pop %v274
    %v289 = vtanh.pop %v279
    %v290 = vtanh.pop %v284
    %v291 = vld [vmem:[%s5] sm:$0xff]
    %v292 = vld [vmem:[%s5 + $0x8] sm:$0xff]
    %v293 = vld [vmem:[%s5 + $0x10] sm:$0xff]
    %v294 = vld [vmem:[%s5 + $0x18] sm:$0xff]
    %296 = vset.pattern.permute.xlu0 0
    %297 = vperm.xlu0 %296, %v291
    %v298 = vpop.permute.xlu0 %297
    %301 = vset.pattern.permute.xlu0 0
    %302 = vperm.xlu0 %301, %v292
    %v303 = vpop.permute.xlu0 %302
    %306 = vset.pattern.permute.xlu0 0
    %307 = vperm.xlu0 %306, %v293
    %v308 = vpop.permute.xlu0 %307
    %311 = vset.pattern.permute.xlu0 0
    %312 = vperm.xlu0 %311, %v294
    %v313 = vpop.permute.xlu0 %312
    %v315 = vmul.f32 %v287, %v298
    %v316 = vmul.f32 %v288, %v303
    %v317 = vmul.f32 %v289, %v308
    %v318 = vmul.f32 %v290, %v313
    %vm319 = vcmask 64512
    %v320 = vsel %vm319, %v315, 0.0
    %v321 = vsel %vm319, %v316, 0.0
    %v322 = vadd.f32 %v320, %v321
    %v323 = vsel %vm319, %v317, 0.0
    %v324 = vadd.f32 %v322, %v323
    %v325 = vsel %vm319, %v318, 0.0
    %v326 = vadd.f32 %v324, %v325
    %v327 = vrot.slane %v326, 4
    %v328 = vadd.f32 %v326, %v327
    %v329 = vrot.slane %v328, 2
    %v330 = vadd.f32 %v328, %v329
    %v331 = vrot.slane %v330, 1
    %v332 = vadd.f32 %v330, %v331
    %v333 = vld [vmem:[#allocation2] sm:$0x1]
    %335 = vset.pattern.permute.xlu0 0
    %336 = vperm.xlu0 %335, %v333
    %v337 = vpop.permute.xlu0 %336
    %v339 = vlaneseq
    %v340 = vshrl.u32 %v339, 7
    %v341 = vsub.s32 0, %v340
    %v342 = vrot.slane %v337, %v341
    %v343 = vadd.f32 %v332, %v342
    %vm344 = vcmask 57344
    %345 = vst.msk [vmem:[#allocation3] sm:$0x1] %vm344, %v343
    // Predicated region
    $region30: #{tpu_custom_call.1} parent=1 // pred_check
      _
    $region31: #{tpu_custom_call.1} parent=1 // pred_check_branch
      %347 = sbr.rel (0) target = $region33
    $region32: #{tpu_custom_call.1} parent=1 // pred_region
      %s349 = ssub.s32 16, 16
      %350 = vsyncadd [#allocation4], %s349
      %s352 = sshll.u32 [#allocation3], 4
      %s353 = int_to_ptr.vmem [resolvable:$true] %s352
      %355 = dma.vmem_to_hbm [thread:$0]  %s353, 16, %s7, [#allocation4]
    $region33: #{tpu_custom_call.1} parent=1 // pred_fallthru
      _
    // Predicated region
    $region34: #{tpu_custom_call.1} parent=1 // pred_check
      _
    $region35: #{tpu_custom_call.1} parent=1 // pred_check_branch
      %357 = sbr.rel (0) target = $region37
    $region36: #{tpu_custom_call.1} parent=1 // pred_region
      %358 = dma.done [#allocation4], 16
    $region37: #{tpu_custom_call.1} parent=1 // pred_fallthru
      _
    %359 = vsyncpa [#allocation4], 1

</llo_original>
